<compile_context>
chip_gen: v7x
topology: tpu7x:2x2x1
jax: 0.10.0
libtpu: 0.0.40
codegen_flags: <defaults>
</compile_context>

<pallas_src>
import functools

import jax
import jax.numpy as jnp
import numpy as np
from jax.experimental import pallas as pl
from jax.experimental.pallas import tpu as pltpu


# ---------------------------------------------------------------------------
# small helpers
# ---------------------------------------------------------------------------
def _round_up(x, m):
    return (x + m - 1) // m * m


def _pad_to(x, shape):
    pads = [(0, s - d) for d, s in zip(x.shape, shape)]
    return jnp.pad(x, pads)


def _tpu_vmem_bytes():
    try:
        return int(pltpu.get_tpu_info().vmem_capacity_bytes)
    except Exception:
        return 64 * 1024 * 1024          # conservative (v7x-sized) fallback


def _largest_tile(total, cap):
    """Largest multiple of 128 that divides `total` (itself a 128-multiple)
    and is <= cap."""
    best = 128
    t = 128
    limit = min(cap, total)
    while t <= limit:
        if total % t == 0:
            best = t
        t += 128
    return best


# ---------------------------------------------------------------------------
# Kernel 1: text head, tiled over class blocks (coarse+fine concatenated).
# Block view is (T, tn, K); one batched (T*tn, K) @ (K, D_pad) MXU matmul,
# per-row L2 norm, template sum via reshape+sum, re-normalize, fold in the
# logit scale, write a lane-dense bf16 block.
# ---------------------------------------------------------------------------
def _text_mean_kernel(tok_ref, w_ref, scale_ref, out_ref):
    T, tn, K = tok_ref.shape
    d = out_ref.shape[-1]

    tok = tok_ref[...].reshape(T * tn, K)                       # layout-preserving
    feats = jnp.dot(tok, w_ref[...], preferred_element_type=jnp.float32)
    feats = feats * jax.lax.rsqrt(
        jnp.maximum(jnp.sum(feats * feats, axis=-1, keepdims=True), 1e-12))

    summed = jnp.sum(feats.reshape(T, tn, d), axis=0)           # /T dropped: cancelled by renorm
    out = summed * jax.lax.rsqrt(
        jnp.maximum(jnp.sum(summed * summed, axis=-1, keepdims=True), 1e-12))

    out_ref[...] = (scale_ref[0, 0] * out).astype(out_ref.dtype)


def encode_text_mean(tokens_pad, w_txt_pad, scale, *, tn):
    """tokens_pad: [T, Ncls_pad, K] bf16 (classes padded to 128-multiple).
    Returns [Ncls_pad, D_pad] bf16 scaled, normalized mean text features."""
    T, N, K = tokens_pad.shape
    D = w_txt_pad.shape[1]
    return pl.pallas_call(
        _text_mean_kernel,
        out_shape=jax.ShapeDtypeStruct((N, D), jnp.bfloat16),
        grid=(N // tn,),
        in_specs=[
            pl.BlockSpec((T, tn, K), lambda i: (0, i, 0)),
            pl.BlockSpec((K, D), lambda i: (0, 0)),
            pl.BlockSpec((1, 1), lambda i: (0, 0),
                         memory_space=pltpu.MemorySpace.SMEM),
        ],
        out_specs=pl.BlockSpec((tn, D), lambda i: (i, 0)),
        compiler_params=pltpu.CompilerParams(
            dimension_semantics=("parallel",)),
    )(tokens_pad, w_txt_pad, scale)


# ---------------------------------------------------------------------------
# Kernel 2: image features.  Grid = (batch tiles [parallel], K tiles
# [arbitrary reduction]); f32 accumulator lives in the resident output block,
# init / normalize gated with pl.when.  This is the HBM-bandwidth-bound loop
# (streams w_img), so it carries the CostEstimate and the VMEM budget.
# ---------------------------------------------------------------------------
def _img_feat_kernel(img_ref, wimg_ref, feat_ref):
    k = pl.program_id(1)

    @pl.when(k == 0)
    def _init():
        feat_ref[...] = jnp.zeros_like(feat_ref)

    feat_ref[...] += jnp.dot(img_ref[...], wimg_ref[...],
                             preferred_element_type=jnp.float32)

    @pl.when(k == pl.num_programs(1) - 1)
    def _finalize():
        f = feat_ref[...]
        feat_ref[...] = f * jax.lax.rsqrt(
            jnp.maximum(jnp.sum(f * f, axis=-1, keepdims=True), 1e-12))


def encode_image(images_pad, w_img_pad, *, bm, tk, vmem_limit):
    Bp, Pp = images_pad.shape
    Dp = w_img_pad.shape[1]
    nb, nk = Bp // bm, Pp // tk
    cost = pl.CostEstimate(
        flops=2 * Bp * Pp * Dp,
        transcendentals=Bp,
        bytes_accessed=Bp * Pp * 2 + nb * Pp * Dp * 2 + Bp * Dp * 4)
    return pl.pallas_call(
        _img_feat_kernel,
        out_shape=jax.ShapeDtypeStruct((Bp, Dp), jnp.float32),
        grid=(nb, nk),
        in_specs=[
            pl.BlockSpec((bm, tk), lambda b, k: (b, k)),
            pl.BlockSpec((tk, Dp), lambda b, k: (k, 0)),
        ],
        out_specs=pl.BlockSpec((bm, Dp), lambda b, k: (b, 0)),
        compiler_params=pltpu.CompilerParams(
            dimension_semantics=("parallel", "arbitrary"),
            vmem_limit_bytes=vmem_limit),
        cost_estimate=cost,
    )(images_pad, w_img_pad)


# ---------------------------------------------------------------------------
# Kernel 3: logits = feats @ text.T (scale already folded into text).  Small,
# both grid axes parallel; dot_general with contracting dims ((1,),(1,)) so no
# transpose is materialized.  Text is only touched here, not held resident
# through the K-sweep above.
# ---------------------------------------------------------------------------
def _logits_kernel(feat_ref, text_ref, out_ref):
    out_ref[...] = jax.lax.dot_general(
        feat_ref[...].astype(text_ref.dtype), text_ref[...],
        dimension_numbers=(((1,), (1,)), ((), ())),
        preferred_element_type=jnp.float32)


def clip_logits(feats_pad, text_all, *, bm, tn):
    Bp, Dp = feats_pad.shape
    Np = text_all.shape[0]
    return pl.pallas_call(
        _logits_kernel,
        out_shape=jax.ShapeDtypeStruct((Bp, Np), jnp.float32),
        grid=(Bp // bm, Np // tn),
        in_specs=[
            pl.BlockSpec((bm, Dp), lambda i, j: (i, 0)),
            pl.BlockSpec((tn, Dp), lambda i, j: (j, 0)),
        ],
        out_specs=pl.BlockSpec((bm, tn), lambda i, j: (i, j)),
        compiler_params=pltpu.CompilerParams(
            dimension_semantics=("parallel", "parallel")),
    )(feats_pad, text_all)


# ---------------------------------------------------------------------------
# One-time setup: pad & cast weights / tokens to TPU-friendly bf16 layouts.
# ---------------------------------------------------------------------------
def prepare_params(params):
    P, D = params["w_img"].shape
    K = params["w_txt"].shape[0]
    Nc = params["text_tokens_coarse"].shape[1]
    Nf = params["text_tokens_fine"].shape[1]
    T = params["text_tokens_coarse"].shape[0]

    D_pad = _round_up(D, 128)
    P128 = _round_up(P, 128)
    Ncls_pad = _round_up(Nc + Nf, 128)

    w_img = _pad_to(params["w_img"].astype(jnp.bfloat16), (P128, D_pad))
    w_txt = _pad_to(params["w_txt"].astype(jnp.bfloat16), (K, D_pad))
    tokens = jnp.concatenate(
        [params["text_tokens_coarse"], params["text_tokens_fine"]], axis=1)
    tokens = _pad_to(tokens.astype(jnp.bfloat16), (T, Ncls_pad, K))

    return {
        "w_img": w_img, "w_txt": w_txt, "tokens": tokens,
        "logit_scale": params["logit_scale"],
        "dims": dict(P=P, D=D, K=K, Nc=Nc, Nf=Nf, T=T,
                     P128=P128, D_pad=D_pad, Ncls_pad=Ncls_pad),
    }


# ---------------------------------------------------------------------------
# Forward wrapper mimicking UnlearningCLIP.forward(images, training)
# ---------------------------------------------------------------------------
def unlearning_clip_forward(prep, images, training, template_idx=0):
    # TODO(synk): pretrained CLIP ViT / text-transformer, clip.tokenize string
    # processing and random.choice(template) have no Pallas equivalent; they
    # are replaced by synthetic linear encoders, precomputed per-(template,
    # class) token features and a deterministic template_idx.
    dims = prep["dims"]
    P128, D_pad, Ncls_pad = dims["P128"], dims["D_pad"], dims["Ncls_pad"]
    D, Nc, Nf = dims["D"], dims["Nc"], dims["Nf"]

    B = images.shape[0]
    images_flat = images.reshape(B, -1).astype(jnp.bfloat16)

    # Batch padding: at least the bf16 sublane pack; tile at 256 for big B.
    B_pad = _round_up(max(B, 1), 16)
    if B_pad > 256:
        B_pad = _round_up(B_pad, 256)
        bm = 256
    else:
        bm = B_pad
    images_pad = _pad_to(images_flat, (B_pad, P128))

    # Per-generation tile / VMEM derivation (v7x 64 MiB vs v5e/v6e 128 MiB).
    vmem_cap = _tpu_vmem_bytes()
    budget = (vmem_cap * 7) // 10
    tk_cap = max(128, (budget - 2 * bm * D_pad * 4) // (4 * (bm + D_pad)))
    tk = _largest_tile(P128, min(tk_cap, 2048))
    est = 2 * 2 * (bm * tk + tk * D_pad) + 2 * bm * D_pad * 4
    vmem_limit = int(min(budget, max(2 * est, 4 * 1024 * 1024)))

    # Text head (coarse+fine classes fused along the class axis).
    scale = jnp.exp(prep["logit_scale"]).reshape(1, 1).astype(jnp.float32)
    tokens = prep["tokens"]
    tok = tokens[template_idx:template_idx + 1] if training else tokens
    tn = _largest_tile(Ncls_pad, 512)
    text_all = encode_text_mean(tok, prep["w_txt"], scale, tn=tn)

    # Image features (bandwidth-bound K-sweep), then logits.
    feats_pad = encode_image(images_pad, prep["w_img"],
                             bm=bm, tk=tk, vmem_limit=vmem_limit)
    logits_pad = clip_logits(feats_pad, text_all, bm=bm, tn=tn)

    image_features = feats_pad[:B, :D]
    logits_coarse = logits_pad[:B, :Nc]
    logits_fine = logits_pad[:B, Nc:Nc + Nf]
    return logits_coarse, logits_fine, image_features


# ---------------------------------------------------------------------------
# Pure-JAX reference (mirrors the kernel's bf16-matmul / f32-accumulate math;
# the 1/T mean and the scale-folding order are mathematically equivalent to
# the original torch forward).
# ---------------------------------------------------------------------------
def reference_forward(params, images, training, template_idx=0):
    images_flat = images.reshape(images.shape[0], -1)
    w_img = params["w_img"].astype(jnp.bfloat16)
    w_txt = params["w_txt"].astype(jnp.bfloat16)
    scale = jnp.exp(params["logit_scale"])

    def l2n(x):
        return x * jax.lax.rsqrt(
            jnp.maximum(jnp.sum(x * x, axis=-1, keepdims=True), 1e-12))

    def txt_head(tok):
        feats = jnp.einsum("tnk,kd->tnd", tok.astype(jnp.bfloat16), w_txt,
                           preferred_element_type=jnp.float32)
        feats = l2n(feats)
        return (scale * l2n(feats.sum(0))).astype(jnp.bfloat16)

    if training:
        tc = txt_head(params["text_tokens_coarse"][template_idx:template_idx + 1])
        tf = txt_head(params["text_tokens_fine"][template_idx:template_idx + 1])
    else:
        tc = txt_head(params["text_tokens_coarse"])
        tf = txt_head(params["text_tokens_fine"])

    feats = jnp.dot(images_flat.astype(jnp.bfloat16), w_img,
                    preferred_element_type=jnp.float32)
    feats = l2n(feats)
    feats_b = feats.astype(jnp.bfloat16)
    lc = jnp.dot(feats_b, tc.T, preferred_element_type=jnp.float32)
    lf = jnp.dot(feats_b, tf.T, preferred_element_type=jnp.float32)
    return lc, lf, feats


# ---------------------------------------------------------------------------
if __name__ == "__main__":
    key = jax.random.PRNGKey(0)
    kx, kwi, kwt, ktc, ktf = jax.random.split(key, 5)

    # Small shapes consistent with the forward semantics.
    B, C, H, W = 2, 4, 16, 16          # images: NCHW
    P = C * H * W                       # flattened pixel dim
    D = 64                              # joint embedding dim
    K = 32                              # synthetic text token-feature dim
    T = 3                               # number of prompt templates
    Nc, Nf = 6, 10                      # coarse / fine class counts

    images = jax.random.normal(kx, (B, C, H, W), dtype=jnp.float32)

    params = {
        "w_img": 0.02 * jax.random.normal(kwi, (P, D), dtype=jnp.float32),
        "w_txt": 0.02 * jax.random.normal(kwt, (K, D), dtype=jnp.float32),
        "text_tokens_coarse": jax.random.normal(ktc, (T, Nc, K), dtype=jnp.float32),
        "text_tokens_fine": jax.random.normal(ktf, (T, Nf, K), dtype=jnp.float32),
        # CLIP init: log(1 / 0.07)
        "logit_scale": jnp.array(np.log(1.0 / 0.07), dtype=jnp.float32),
    }

    prep = prepare_params(params)   # one-time setup: pad + cast to bf16

    for training in (False, True):
        lc, lf, feats = unlearning_clip_forward(prep, images, training)
        jax.block_until_ready((lc, lf, feats))
        rc, rf, rfeat = reference_forward(params, images, training)
        assert lc.shape == (B, Nc) and lf.shape == (B, Nf) and feats.shape == (B, D)
        np.testing.assert_allclose(np.asarray(lc), np.asarray(rc), rtol=5e-3, atol=5e-3)
        np.testing.assert_allclose(np.asarray(lf), np.asarray(rf), rtol=5e-3, atol=5e-3)
        np.testing.assert_allclose(np.asarray(feats), np.asarray(rfeat), rtol=5e-3, atol=5e-3)

    print("KERNEL_OK")
</pallas_src>

<mosaic_0001>
module attributes {stable_mosaic.version = 11 : i64} {
  func.func @_text_mean_kernel(%arg0: i32, %arg1: memref<3x128x32xbf16, #tpu.memory_space<vmem>>, %arg2: memref<32x128xbf16, #tpu.memory_space<vmem>>, %arg3: memref<1x1xf32, #tpu.memory_space<smem>>, %arg4: memref<128x128xbf16, #tpu.memory_space<vmem>>) attributes {dimension_semantics = [#tpu.dimension_semantics<parallel>], iteration_bounds = array<i64: 1>, scalar_prefetch = 0 : i64, scratch_operands = 0 : i64, tpu.core_type = #tpu.core_type<tc>, window_params = [{transform_indices = @transform_0, window_bounds = array<i64: 3, 128, 32>}, {pipeline_mode = #tpu.pipeline_mode<synchronous>, transform_indices = @transform_1, window_bounds = array<i64: 32, 128>}, {transform_indices = @transform_2, window_bounds = array<i64: 1, 1>}, {transform_indices = @transform_3, window_bounds = array<i64: 128, 128>}]} {
    %c0 = arith.constant 0 : index
    %c0_0 = arith.constant 0 : index
    %c0_1 = arith.constant 0 : index
    %0 = vector.load %arg1[%c0, %c0_0, %c0_1] : memref<3x128x32xbf16, #tpu.memory_space<vmem>>, vector<3x128x32xbf16>
    %1 = vector.shape_cast %0 : vector<3x128x32xbf16> to vector<384x32xbf16>
    %c0_2 = arith.constant 0 : index
    %c0_3 = arith.constant 0 : index
    %2 = vector.load %arg2[%c0_2, %c0_3] : memref<32x128xbf16, #tpu.memory_space<vmem>>, vector<32x128xbf16>
    %cst = arith.constant dense<0.000000e+00> : vector<384x128xf32>
    %3 = tpu.matmul %1, %2, %cst {dimension_numbers = #tpu.dot_dimension_numbers<[1], [0], [0], [1], [0, 0, 1, 1], [], []>} : vector<384x32xbf16>, vector<32x128xbf16>, vector<384x128xf32> -> vector<384x128xf32>
    %4 = arith.mulf %3, %3 : vector<384x128xf32>
    %cst_4 = arith.constant dense<0.000000e+00> : vector<384xf32>
    %5 = vector.multi_reduction <add>, %4, %cst_4 [1] : vector<384x128xf32> to vector<384xf32>
    %6 = vector.shape_cast %5 : vector<384xf32> to vector<384x1xf32>
    %cst_5 = arith.constant 9.99999996E-13 : f32
    %7 = vector.broadcast %cst_5 : f32 to vector<384x1xf32>
    %8 = arith.maximumf %6, %7 : vector<384x1xf32>
    %9 = math.rsqrt %8 : vector<384x1xf32>
    %10 = vector.broadcast %9 : vector<384x1xf32> to vector<384x128xf32>
    %11 = arith.mulf %3, %10 : vector<384x128xf32>
    %12 = vector.shape_cast %11 : vector<384x128xf32> to vector<3x128x128xf32>
    %cst_6 = arith.constant dense<0.000000e+00> : vector<128x128xf32>
    %13 = vector.multi_reduction <add>, %12, %cst_6 [0] : vector<3x128x128xf32> to vector<128x128xf32>
    %14 = arith.mulf %13, %13 : vector<128x128xf32>
    %cst_7 = arith.constant dense<0.000000e+00> : vector<128xf32>
    %15 = vector.multi_reduction <add>, %14, %cst_7 [1] : vector<128x128xf32> to vector<128xf32>
    %16 = vector.shape_cast %15 : vector<128xf32> to vector<128x1xf32>
    %cst_8 = arith.constant 9.99999996E-13 : f32
    %17 = vector.broadcast %cst_8 : f32 to vector<128x1xf32>
    %18 = arith.maximumf %16, %17 : vector<128x1xf32>
    %19 = math.rsqrt %18 : vector<128x1xf32>
    %20 = vector.broadcast %19 : vector<128x1xf32> to vector<128x128xf32>
    %21 = arith.mulf %13, %20 : vector<128x128xf32>
    %c0_9 = arith.constant 0 : index
    %c0_10 = arith.constant 0 : index
    %22 = memref.load %arg3[%c0_9, %c0_10] : memref<1x1xf32, #tpu.memory_space<smem>>
    %23 = vector.broadcast %22 : f32 to vector<128x128xf32>
    %24 = arith.mulf %23, %21 : vector<128x128xf32>
    %25 = arith.truncf %24 : vector<128x128xf32> to vector<128x128xbf16>
    %c0_11 = arith.constant 0 : index
    %c0_12 = arith.constant 0 : index
    %26 = vector.load %arg4[%c0_11, %c0_12] : memref<128x128xbf16, #tpu.memory_space<vmem>>, vector<128x128xbf16>
    tpu.vector_store %arg4[%c0_11, %c0_12], %25 {strides = array<i32>} : memref<128x128xbf16, #tpu.memory_space<vmem>>, vector<128x128xbf16>,
    return
  }
  func.func @transform_0(%arg0: i32) -> (i32, i32, i32) {
    %c0_i32 = arith.constant 0 : i32
    %c0_i32_0 = arith.constant 0 : i32
    %c0_i32_1 = arith.constant 0 : i32
    return %c0_i32, %arg0, %c0_i32_0 : i32, i32, i32
  }
  func.func @transform_1(%arg0: i32) -> (i32, i32) {
    %c0_i32 = arith.constant 0 : i32
    %c0_i32_0 = arith.constant 0 : i32
    %c0_i32_1 = arith.constant 0 : i32
    return %c0_i32, %c0_i32_0 : i32, i32
  }
  func.func @transform_2(%arg0: i32) -> (i32, i32) {
    %c0_i32 = arith.constant 0 : i32
    %c0_i32_0 = arith.constant 0 : i32
    %c0_i32_1 = arith.constant 0 : i32
    return %c0_i32, %c0_i32_0 : i32, i32
  }
  func.func @transform_3(%arg0: i32) -> (i32, i32) {
    %c0_i32 = arith.constant 0 : i32
    %c0_i32_0 = arith.constant 0 : i32
    return %arg0, %c0_i32 : i32, i32
  }
}

</mosaic_0001>

<llo_original>
// kernel: tpu_custom_call.1
$region0: #{tpu_custom_call.1}
  #allocation0 [shape = 'u32[]', space=smem, size = 0x4, offset = 0x4, fixed_abs, tag = 'smem constant byte address 0x4 - core index']
  #allocation1 [shape = 'u32[144,128]{1,0:T(1,128)}', space=vmem, size = 0x12000, scoped, tag = 'internal scratch']
  #allocation2 [shape = 'f32[1,1]{1,0:T(1,128)S(6)}', space=smem, size = 0x200, scoped, tag = 'scoped memory for tpu_custom_call.1']
  %s0 = inlined_call_operand.vmem [shape: bf16[3,128,32], index: 0, kind: input, shape index: {}]
  %s1 = inlined_call_operand.vmem [shape: bf16[32,128], index: 1, kind: input, shape index: {}]
  %s2 = inlined_call_operand.<no memory space> [shape: f32[1,1], index: 2, kind: input, shape index: {}]
  %s3 = inlined_call_operand.hbm [shape: bf16[128,128], index: 3, kind: output, shape index: {}]
  %s4 = sld [smem:[#allocation0]]
  $region22: #{tpu_custom_call.1} parent=0
    _
  %s6 = ssub.s32 1, %s4
  %s7 = scalar_select 0, %s6, %s4
  %8 = sst [smem:[#allocation2]] %s2
  $region1: #{tpu_custom_call.1} parent=0
    #allocation3 [shape = 'u8[32768]{0}', space=vmem, size = 0x8000, scoped, tag = 'output window, operand 0, single buffered']
    #allocation4 [shape = 's32[1]{0}', space=sflag, size = 0x4, scoped, tag = 'scoped memory for tpu_custom_call.1']
    %9 = vsyncpa [#allocation4], 0
    // Predicated region
    $region2: #{tpu_custom_call.1} parent=1 // pred_check
      _
    $region3: #{tpu_custom_call.1} parent=1 // pred_check_branch
      %11 = sbr.rel (0) target = $region5
    $region4: #{tpu_custom_call.1} parent=1 // pred_region
      _
    $region5: #{tpu_custom_call.1} parent=1 // pred_fallthru
      _
    // Predicated region
    $region6: #{tpu_custom_call.1} parent=1 // pred_check
      _
    $region7: #{tpu_custom_call.1} parent=1 // pred_check_branch
      %13 = sbr.rel (0) target = $region9
    $region8: #{tpu_custom_call.1} parent=1 // pred_region
      _
    $region9: #{tpu_custom_call.1} parent=1 // pred_fallthru
      _
    // Predicated region
    $region10: #{tpu_custom_call.1} parent=1 // pred_check
      _
    $region11: #{tpu_custom_call.1} parent=1 // pred_check_branch
      %15 = sbr.rel (0) target = $region13
    $region12: #{tpu_custom_call.1} parent=1 // pred_region
      _
    $region13: #{tpu_custom_call.1} parent=1 // pred_fallthru
      _
    %v17 = vld [vmem:[%s0] sm:$0xf]
    %v18 = vld [vmem:[%s0 + $0x4] sm:$0xf]
    %v19 = vld [vmem:[%s0 + $0x8] sm:$0xf]
    %v20 = vld [vmem:[%s0 + $0xc] sm:$0xf]
    %v21 = vld [vmem:[%s0 + $0x10] sm:$0xf]
    %v22 = vld [vmem:[%s0 + $0x14] sm:$0xf]
    %v23 = vld [vmem:[%s0 + $0x18] sm:$0xf]
    %v24 = vld [vmem:[%s0 + $0x1c] sm:$0xf]
    %v25 = vld [vmem:[%s0 + $0x20] sm:$0xf]
    %v26 = vld [vmem:[%s0 + $0x24] sm:$0xf]
    %v27 = vld [vmem:[%s0 + $0x28] sm:$0xf]
    %v28 = vld [vmem:[%s0 + $0x2c] sm:$0xf]
    %v29 = vld [vmem:[%s0 + $0x30] sm:$0xf]
    %v30 = vld [vmem:[%s0 + $0x34] sm:$0xf]
    %v31 = vld [vmem:[%s0 + $0x38] sm:$0xf]
    %v32 = vld [vmem:[%s0 + $0x3c] sm:$0xf]
    %v33 = vld [vmem:[%s0 + $0x40] sm:$0xf]
    %v34 = vld [vmem:[%s0 + $0x44] sm:$0xf]
    %v35 = vld [vmem:[%s0 + $0x48] sm:$0xf]
    %v36 = vld [vmem:[%s0 + $0x4c] sm:$0xf]
    %v37 = vld [vmem:[%s0 + $0x50] sm:$0xf]
    %v38 = vld [vmem:[%s0 + $0x54] sm:$0xf]
    %v39 = vld [vmem:[%s0 + $0x58] sm:$0xf]
    %v40 = vld [vmem:[%s0 + $0x5c] sm:$0xf]
    %v41 = vld [vmem:[%s0 + $0x60] sm:$0xf]
    %v42 = vld [vmem:[%s0 + $0x64] sm:$0xf]
    %v43 = vld [vmem:[%s0 + $0x68] sm:$0xf]
    %v44 = vld [vmem:[%s0 + $0x6c] sm:$0xf]
    %v45 = vld [vmem:[%s0 + $0x70] sm:$0xf]
    %v46 = vld [vmem:[%s0 + $0x74] sm:$0xf]
    %v47 = vld [vmem:[%s0 + $0x78] sm:$0xf]
    %v48 = vld [vmem:[%s0 + $0x7c] sm:$0xf]
    %v49 = vld [vmem:[%s0 + $0x80] sm:$0xf]
    %v50 = vld [vmem:[%s0 + $0x84] sm:$0xf]
    %v51 = vld [vmem:[%s0 + $0x88] sm:$0xf]
    %v52 = vld [vmem:[%s0 + $0x8c] sm:$0xf]
    %v53 = vld [vmem:[%s0 + $0x90] sm:$0xf]
    %v54 = vld [vmem:[%s0 + $0x94] sm:$0xf]
    %v55 = vld [vmem:[%s0 + $0x98] sm:$0xf]
    %v56 = vld [vmem:[%s0 + $0x9c] sm:$0xf]
    %v57 = vld [vmem:[%s0 + $0xa0] sm:$0xf]
    %v58 = vld [vmem:[%s0 + $0xa4] sm:$0xf]
    %v59 = vld [vmem:[%s0 + $0xa8] sm:$0xf]
    %v60 = vld [vmem:[%s0 + $0xac] sm:$0xf]
    %v61 = vld [vmem:[%s0 + $0xb0] sm:$0xf]
    %v62 = vld [vmem:[%s0 + $0xb4] sm:$0xf]
    %v63 = vld [vmem:[%s0 + $0xb8] sm:$0xf]
    %v64 = vld [vmem:[%s0 + $0xbc] sm:$0xf]
    %v65 = vld [vmem:[%s1] sm:$0xf]
    %v66 = vld [vmem:[%s1 + $0x4] sm:$0xf]
    %v67 = vld [vmem:[%s1 + $0x8] sm:$0xf]
    %v68 = vld [vmem:[%s1 + $0xc] sm:$0xf]
    %v117 = vunpack.c.l.b16 %v17
    %v118 = vunpack.c.l.b16 %v18
    %v119 = vunpack.c.l.b16 %v19
    %v120 = vunpack.c.l.b16 %v20
    %v121 = vunpack.c.l.b16 %v21
    %v122 = vunpack.c.l.b16 %v22
    %v123 = vunpack.c.l.b16 %v23
    %v124 = vunpack.c.l.b16 %v24
    %v125 = vunpack.c.l.b16 %v25
    %v126 = vunpack.c.l.b16 %v26
    %v127 = vunpack.c.l.b16 %v27
    %v128 = vunpack.c.l.b16 %v28
    %v129 = vunpack.c.l.b16 %v29
    %v130 = vunpack.c.l.b16 %v30
    %v131 = vunpack.c.l.b16 %v31
    %v132 = vunpack.c.l.b16 %v32
    %v133 = vunpack.c.l.b16 %v33
    %v134 = vunpack.c.l.b16 %v34
    %v135 = vunpack.c.l.b16 %v35
    %v136 = vunpack.c.l.b16 %v36
    %v137 = vunpack.c.l.b16 %v37
    %v138 = vunpack.c.l.b16 %v38
    %v139 = vunpack.c.l.b16 %v39
    %v140 = vunpack.c.l.b16 %v40
    %v141 = vunpack.c.l.b16 %v41
    %v142 = vunpack.c.l.b16 %v42
    %v143 = vunpack.c.l.b16 %v43
    %v144 = vunpack.c.l.b16 %v44
    %v145 = vunpack.c.l.b16 %v45
    %v146 = vunpack.c.l.b16 %v46
    %v147 = vunpack.c.l.b16 %v47
    %v148 = vunpack.c.l.b16 %v48
    %v149 = vunpack.c.l.b16 %v49
    %v150 = vunpack.c.l.b16 %v50
    %v151 = vunpack.c.l.b16 %v51
    %v152 = vunpack.c.l.b16 %v52
    %v153 = vunpack.c.l.b16 %v53
    %v154 = vunpack.c.l.b16 %v54
    %v155 = vunpack.c.l.b16 %v55
    %v156 = vunpack.c.l.b16 %v56
    %v157 = vunpack.c.l.b16 %v57
    %v158 = vunpack.c.l.b16 %v58
    %v159 = vunpack.c.l.b16 %v59
    %v160 = vunpack.c.l.b16 %v60
    %v161 = vunpack.c.l.b16 %v61
    %v162 = vunpack.c.l.b16 %v62
    %v163 = vunpack.c.l.b16 %v63
    %v164 = vunpack.c.l.b16 %v64
    %v165 = vpack.c.b16 %v118, %v117
    %v166 = vpack.c.b16 %v120, %v119
    %v167 = vpack.c.b16 %v122, %v121
    %v168 = vpack.c.b16 %v124, %v123
    %v169 = vpack.c.b16 %v126, %v125
    %v170 = vpack.c.b16 %v128, %v127
    %v171 = vpack.c.b16 %v130, %v129
    %v172 = vpack.c.b16 %v132, %v131
    %v173 = vpack.c.b16 %v134, %v133
    %v174 = vpack.c.b16 %v136, %v135
    %v175 = vpack.c.b16 %v138, %v137
    %v176 = vpack.c.b16 %v140, %v139
    %v177 = vpack.c.b16 %v142, %v141
    %v178 = vpack.c.b16 %v144, %v143
    %v179 = vpack.c.b16 %v146, %v145
    %v180 = vpack.c.b16 %v148, %v147
    %v181 = vpack.c.b16 %v150, %v149
    %v182 = vpack.c.b16 %v152, %v151
    %v183 = vpack.c.b16 %v154, %v153
    %v184 = vpack.c.b16 %v156, %v155
    %v185 = vpack.c.b16 %v158, %v157
    %v186 = vpack.c.b16 %v160, %v159
    %v187 = vpack.c.b16 %v162, %v161
    %v188 = vpack.c.b16 %v164, %v163
    %v193 = vunpack.c.l.b16 %v65
    %v194 = vunpack.c.l.b16 %v66
    %v195 = vunpack.c.l.b16 %v67
    %v196 = vunpack.c.l.b16 %v68
    %v197 = vpack.c.b16 %v194, %v193
    %v198 = vpack.c.b16 %v196, %v195
    %vm201 = vcmask 261120
    %v203 = vsel %vm201, %v165, 0
    %v206 = vsel %vm201, %v166, 0
    %v209 = vsel %vm201, %v167, 0
    %v212 = vsel %vm201, %v168, 0
    %v215 = vsel %vm201, %v169, 0
    %v218 = vsel %vm201, %v170, 0
    %v221 = vsel %vm201, %v171, 0
    %v224 = vsel %vm201, %v172, 0
    %v227 = vsel %vm201, %v173, 0
    %v230 = vsel %vm201, %v174, 0
    %v233 = vsel %vm201, %v175, 0
    %v236 = vsel %vm201, %v176, 0
    %v239 = vsel %vm201, %v177, 0
    %v242 = vsel %vm201, %v178, 0
    %v245 = vsel %vm201, %v179, 0
    %v248 = vsel %vm201, %v180, 0
    %v251 = vsel %vm201, %v181, 0
    %v254 = vsel %vm201, %v182, 0
    %v257 = vsel %vm201, %v183, 0
    %v260 = vsel %vm201, %v184, 0
    %v263 = vsel %vm201, %v185, 0
    %v266 = vsel %vm201, %v186, 0
    %v269 = vsel %vm201, %v187, 0
    %v272 = vsel %vm201, %v188, 0
    %274 = vmatprep.subr.bf16.mxu0 0
    %275 = vmatpush1.bf16.msra.mxu0 %v197
    %276 = vmatprep.subr.bf16.mxu0 0
    %277 = vmatpush1.bf16.msra.mxu0 %v198
    %278 = vmatprep.subr.bf16.mxu0 0
    %279 = vmatpush1.bf16.msra.mxu0 0
    %280 = vmatprep.subr.bf16.mxu0 0
    %281 = vmatpush1.bf16.msra.mxu0 0
    %282 = vmatprep.subr.bf16.mxu0 0
    %283 = vmatpush1.bf16.msra.mxu0 0
    %284 = vmatprep.subr.bf16.mxu0 0
    %285 = vmatpush1.bf16.msra.mxu0 0
    %286 = vmatprep.subr.bf16.mxu0 0
    %287 = vmatpush1.bf16.msra.mxu0 0
    %288 = vmatprep.subr.bf16.mxu0 0
    %289 = vmatpush1.bf16.msra.mxu0 0
    %290 = vmatprep.subr.bf16.mxu0 0
    %291 = vmatpush1.bf16.msra.mxu0 0
    %292 = vmatprep.subr.bf16.mxu0 0
    %293 = vmatpush1.bf16.msra.mxu0 0
    %294 = vmatprep.subr.bf16.mxu0 0
    %295 = vmatpush1.bf16.msra.mxu0 0
    %296 = vmatprep.subr.bf16.mxu0 0
    %297 = vmatpush1.bf16.msra.mxu0 0
    %298 = vmatprep.subr.bf16.mxu0 0
    %299 = vmatpush1.bf16.msra.mxu0 0
    %300 = vmatprep.subr.bf16.mxu0 0
    %301 = vmatpush1.bf16.msra.mxu0 0
    %302 = vmatprep.subr.bf16.mxu0 0
    %303 = vmatpush1.bf16.msra.mxu0 0
    %304 = vmatprep.subr.bf16.mxu0 0
    %305 = vmatpush1.bf16.msra.mxu0 0
    %306 = vmatprep.mubr.bf16.mxu0 0
    %307 = vmatmul.mubr.bf16.gmra.mrb[0].mxu0 %v203
    %v308 = vpop.f32.mrb[0].mxu0
    %v309 = vadd.f32 0.0, %v308
    %v310 = vpop.f32.mrb[0].mxu0
    %v311 = vpop.f32.mrb[0].mxu0
    %v312 = vadd.f32 0.0, %v311
    %v313 = vpop.f32.mrb[0].mxu0
    %314 = vmatprep.mubr.bf16.mxu0 0
    %315 = vmatmul.mubr.bf16.gmra.mrb[0].mxu0 %v206
    %v316 = vpop.f32.mrb[0].mxu0
    %v317 = vadd.f32 0.0, %v316
    %v318 = vpop.f32.mrb[0].mxu0
    %v319 = vpop.f32.mrb[0].mxu0
    %v320 = vadd.f32 0.0, %v319
    %v321 = vpop.f32.mrb[0].mxu0
    %322 = vmatprep.mubr.bf16.mxu0 0
    %323 = vmatmul.mubr.bf16.gmra.mrb[0].mxu0 %v209
    %v324 = vpop.f32.mrb[0].mxu0
    %v325 = vadd.f32 0.0, %v324
    %v326 = vpop.f32.mrb[0].mxu0
    %v327 = vpop.f32.mrb[0].mxu0
    %v328 = vadd.f32 0.0, %v327
    %v329 = vpop.f32.mrb[0].mxu0
    %330 = vmatprep.mubr.bf16.mxu0 0
    %331 = vmatmul.mubr.bf16.gmra.mrb[0].mxu0 %v212
    %v332 = vpop.f32.mrb[0].mxu0
    %v333 = vadd.f32 0.0, %v332
    %v334 = vpop.f32.mrb[0].mxu0
    %v335 = vpop.f32.mrb[0].mxu0
    %v336 = vadd.f32 0.0, %v335
    %v337 = vpop.f32.mrb[0].mxu0
    %338 = vmatprep.mubr.bf16.mxu0 0
    %339 = vmatmul.mubr.bf16.gmra.mrb[0].mxu0 %v215
    %v340 = vpop.f32.mrb[0].mxu0
    %v341 = vadd.f32 0.0, %v340
    %v342 = vpop.f32.mrb[0].mxu0
    %v343 = vpop.f32.mrb[0].mxu0
    %v344 = vadd.f32 0.0, %v343
    %v345 = vpop.f32.mrb[0].mxu0
    %346 = vmatprep.mubr.bf16.mxu0 0
    %347 = vmatmul.mubr.bf16.gmra.mrb[0].mxu0 %v218
    %v348 = vpop.f32.mrb[0].mxu0
    %v349 = vadd.f32 0.0, %v348
    %v350 = vpop.f32.mrb[0].mxu0
    %v351 = vpop.f32.mrb[0].mxu0
    %v352 = vadd.f32 0.0, %v351
    %v353 = vpop.f32.mrb[0].mxu0
    %354 = vmatprep.mubr.bf16.mxu0 0
    %355 = vmatmul.mubr.bf16.gmra.mrb[0].mxu0 %v221
    %v356 = vpop.f32.mrb[0].mxu0
    %v357 = vadd.f32 0.0, %v356
    %v358 = vpop.f32.mrb[0].mxu0
    %v359 = vpop.f32.mrb[0].mxu0
    %v360 = vadd.f32 0.0, %v359
    %v361 = vpop.f32.mrb[0].mxu0
    %362 = vmatprep.mubr.bf16.mxu0 0
    %363 = vmatmul.mubr.bf16.gmra.mrb[0].mxu0 %v224
    %v364 = vpop.f32.mrb[0].mxu0
    %v365 = vadd.f32 0.0, %v364
    %v366 = vpop.f32.mrb[0].mxu0
    %v367 = vpop.f32.mrb[0].mxu0
    %v368 = vadd.f32 0.0, %v367
    %v369 = vpop.f32.mrb[0].mxu0
    %370 = vmatprep.mubr.bf16.mxu0 0
    %371 = vmatmul.mubr.bf16.gmra.mrb[0].mxu0 %v227
    %v372 = vpop.f32.mrb[0].mxu0
    %v373 = vadd.f32 0.0, %v372
    %v374 = vpop.f32.mrb[0].mxu0
    %v375 = vpop.f32.mrb[0].mxu0
    %v376 = vadd.f32 0.0, %v375
    %v377 = vpop.f32.mrb[0].mxu0
    %378 = vmatprep.mubr.bf16.mxu0 0
    %379 = vmatmul.mubr.bf16.gmra.mrb[0].mxu0 %v230
    %v380 = vpop.f32.mrb[0].mxu0
    %v381 = vadd.f32 0.0, %v380
    %v382 = vpop.f32.mrb[0].mxu0
    %v383 = vpop.f32.mrb[0].mxu0
    %v384 = vadd.f32 0.0, %v383
    %v385 = vpop.f32.mrb[0].mxu0
    %386 = vmatprep.mubr.bf16.mxu0 0
    %387 = vmatmul.mubr.bf16.gmra.mrb[0].mxu0 %v233
    %v388 = vpop.f32.mrb[0].mxu0
    %v389 = vadd.f32 0.0, %v388
    %v390 = vpop.f32.mrb[0].mxu0
    %v391 = vpop.f32.mrb[0].mxu0
    %v392 = vadd.f32 0.0, %v391
    %v393 = vpop.f32.mrb[0].mxu0
    %394 = vmatprep.mubr.bf16.mxu0 0
    %395 = vmatmul.mubr.bf16.gmra.mrb[0].mxu0 %v236
    %v396 = vpop.f32.mrb[0].mxu0
    %v397 = vadd.f32 0.0, %v396
    %v398 = vpop.f32.mrb[0].mxu0
    %v399 = vpop.f32.mrb[0].mxu0
    %v400 = vadd.f32 0.0, %v399
    %v401 = vpop.f32.mrb[0].mxu0
    %402 = vmatprep.mubr.bf16.mxu0 0
    %403 = vmatmul.mubr.bf16.gmra.mrb[0].mxu0 %v239
    %v404 = vpop.f32.mrb[0].mxu0
    %v405 = vadd.f32 0.0, %v404
    %v406 = vpop.f32.mrb[0].mxu0
    %v407 = vpop.f32.mrb[0].mxu0
    %v408 = vadd.f32 0.0, %v407
    %v409 = vpop.f32.mrb[0].mxu0
    %410 = vmatprep.mubr.bf16.mxu0 0
    %411 = vmatmul.mubr.bf16.gmra.mrb[0].mxu0 %v242
    %v412 = vpop.f32.mrb[0].mxu0
    %v413 = vadd.f32 0.0, %v412
    %v414 = vpop.f32.mrb[0].mxu0
    %v415 = vpop.f32.mrb[0].mxu0
    %v416 = vadd.f32 0.0, %v415
    %v417 = vpop.f32.mrb[0].mxu0
    %418 = vmatprep.mubr.bf16.mxu0 0
    %419 = vmatmul.mubr.bf16.gmra.mrb[0].mxu0 %v245
    %v420 = vpop.f32.mrb[0].mxu0
    %v421 = vadd.f32 0.0, %v420
    %v422 = vpop.f32.mrb[0].mxu0
    %v423 = vpop.f32.mrb[0].mxu0
    %v424 = vadd.f32 0.0, %v423
    %v425 = vpop.f32.mrb[0].mxu0
    %426 = vmatprep.mubr.bf16.mxu0 0
    %427 = vmatmul.mubr.bf16.gmra.mrb[0].mxu0 %v248
    %v428 = vpop.f32.mrb[0].mxu0
    %v429 = vadd.f32 0.0, %v428
    %v430 = vpop.f32.mrb[0].mxu0
    %v431 = vpop.f32.mrb[0].mxu0
    %v432 = vadd.f32 0.0, %v431
    %v433 = vpop.f32.mrb[0].mxu0
    %434 = vmatprep.mubr.bf16.mxu0 0
    %435 = vmatmul.mubr.bf16.gmra.mrb[0].mxu0 %v251
    %v436 = vpop.f32.mrb[0].mxu0
    %v437 = vadd.f32 0.0, %v436
    %v438 = vpop.f32.mrb[0].mxu0
    %v439 = vpop.f32.mrb[0].mxu0
    %v440 = vadd.f32 0.0, %v439
    %v441 = vpop.f32.mrb[0].mxu0
    %442 = vmatprep.mubr.bf16.mxu0 0
    %443 = vmatmul.mubr.bf16.gmra.mrb[0].mxu0 %v254
    %v444 = vpop.f32.mrb[0].mxu0
    %v445 = vadd.f32 0.0, %v444
    %v446 = vpop.f32.mrb[0].mxu0
    %v447 = vpop.f32.mrb[0].mxu0
    %v448 = vadd.f32 0.0, %v447
    %v449 = vpop.f32.mrb[0].mxu0
    %450 = vmatprep.mubr.bf16.mxu0 0
    %451 = vmatmul.mubr.bf16.gmra.mrb[0].mxu0 %v257
    %v452 = vpop.f32.mrb[0].mxu0
    %v453 = vadd.f32 0.0, %v452
    %v454 = vpop.f32.mrb[0].mxu0
    %v455 = vpop.f32.mrb[0].mxu0
    %v456 = vadd.f32 0.0, %v455
    %v457 = vpop.f32.mrb[0].mxu0
    %458 = vmatprep.mubr.bf16.mxu0 0
    %459 = vmatmul.mubr.bf16.gmra.mrb[0].mxu0 %v260
    %v460 = vpop.f32.mrb[0].mxu0
    %v461 = vadd.f32 0.0, %v460
    %v462 = vpop.f32.mrb[0].mxu0
    %v463 = vpop.f32.mrb[0].mxu0
    %v464 = vadd.f32 0.0, %v463
    %v465 = vpop.f32.mrb[0].mxu0
    %466 = vmatprep.mubr.bf16.mxu0 0
    %467 = vmatmul.mubr.bf16.gmra.mrb[0].mxu0 %v263
    %v468 = vpop.f32.mrb[0].mxu0
    %v469 = vadd.f32 0.0, %v468
    %v470 = vpop.f32.mrb[0].mxu0
    %v471 = vpop.f32.mrb[0].mxu0
    %v472 = vadd.f32 0.0, %v471
    %v473 = vpop.f32.mrb[0].mxu0
    %474 = vmatprep.mubr.bf16.mxu0 0
    %475 = vmatmul.mubr.bf16.gmra.mrb[0].mxu0 %v266
    %v476 = vpop.f32.mrb[0].mxu0
    %v477 = vadd.f32 0.0, %v476
    %v478 = vpop.f32.mrb[0].mxu0
    %v479 = vpop.f32.mrb[0].mxu0
    %v480 = vadd.f32 0.0, %v479
    %v481 = vpop.f32.mrb[0].mxu0
    %482 = vmatprep.mubr.bf16.mxu0 0
    %483 = vmatmul.mubr.bf16.gmra.mrb[0].mxu0 %v269
    %v484 = vpop.f32.mrb[0].mxu0
    %v485 = vadd.f32 0.0, %v484
    %v486 = vpop.f32.mrb[0].mxu0
    %v487 = vpop.f32.mrb[0].mxu0
    %v488 = vadd.f32 0.0, %v487
    %v489 = vpop.f32.mrb[0].mxu0
    %490 = vmatprep.mubr.bf16.mxu0 0
    %491 = vmatmul.mubr.bf16.gmra.mrb[0].mxu0 %v272
    %v492 = vpop.f32.mrb[0].mxu0
    %v493 = vadd.f32 0.0, %v492
    %v494 = vpop.f32.mrb[0].mxu0
    %v495 = vpop.f32.mrb[0].mxu0
    %v496 = vadd.f32 0.0, %v495
    %v497 = vpop.f32.mrb[0].mxu0
    %498 = vdwg.mxu0
    %v499 = vmul.f32 %v309, %v309
    %v500 = vmul.f32 %v312, %v312
    %v501 = vmul.f32 %v317, %v317
    %v502 = vmul.f32 %v320, %v320
    %v503 = vmul.f32 %v325, %v325
    %v504 = vmul.f32 %v328, %v328
    %v505 = vmul.f32 %v333, %v333
    %v506 = vmul.f32 %v336, %v336
    %v507 = vmul.f32 %v341, %v341
    %v508 = vmul.f32 %v344, %v344
    %v509 = vmul.f32 %v349, %v349
    %v510 = vmul.f32 %v352, %v352
    %v511 = vmul.f32 %v357, %v357
    %v512 = vmul.f32 %v360, %v360
    %v513 = vmul.f32 %v365, %v365
    %v514 = vmul.f32 %v368, %v368
    %v515 = vmul.f32 %v373, %v373
    %v516 = vmul.f32 %v376, %v376
    %v517 = vmul.f32 %v381, %v381
    %v518 = vmul.f32 %v384, %v384
    %v519 = vmul.f32 %v389, %v389
    %v520 = vmul.f32 %v392, %v392
    %v521 = vmul.f32 %v397, %v397
    %v522 = vmul.f32 %v400, %v400
    %v523 = vmul.f32 %v405, %v405
    %v524 = vmul.f32 %v408, %v408
    %v525 = vmul.f32 %v413, %v413
    %v526 = vmul.f32 %v416, %v416
    %v527 = vmul.f32 %v421, %v421
    %v528 = vmul.f32 %v424, %v424
    %v529 = vmul.f32 %v429, %v429
    %v530 = vmul.f32 %v432, %v432
    %v531 = vmul.f32 %v437, %v437
    %v532 = vmul.f32 %v440, %v440
    %v533 = vmul.f32 %v445, %v445
    %v534 = vmul.f32 %v448, %v448
    %v535 = vmul.f32 %v453, %v453
    %v536 = vmul.f32 %v456, %v456
    %v537 = vmul.f32 %v461, %v461
    %v538 = vmul.f32 %v464, %v464
    %v539 = vmul.f32 %v469, %v469
    %v540 = vmul.f32 %v472, %v472
    %v541 = vmul.f32 %v477, %v477
    %v542 = vmul.f32 %v480, %v480
    %v543 = vmul.f32 %v485, %v485
    %v544 = vmul.f32 %v488, %v488
    %v545 = vmul.f32 %v493, %v493
    %v546 = vmul.f32 %v496, %v496
    %547 = vadd.xlane.f32.xlu0 %v499
    %v548 = vpop.xlane.xlu0 %547
    %549 = vadd.xlane.f32.xlu0 %v500
    %v550 = vpop.xlane.xlu0 %549
    %551 = vadd.xlane.f32.xlu0 %v501
    %v552 = vpop.xlane.xlu0 %551
    %553 = vadd.xlane.f32.xlu0 %v502
    %v554 = vpop.xlane.xlu0 %553
    %555 = vadd.xlane.f32.xlu0 %v503
    %v556 = vpop.xlane.xlu0 %555
    %557 = vadd.xlane.f32.xlu0 %v504
    %v558 = vpop.xlane.xlu0 %557
    %559 = vadd.xlane.f32.xlu0 %v505
    %v560 = vpop.xlane.xlu0 %559
    %561 = vadd.xlane.f32.xlu0 %v506
    %v562 = vpop.xlane.xlu0 %561
    %563 = vadd.xlane.f32.xlu0 %v507
    %v564 = vpop.xlane.xlu0 %563
    %565 = vadd.xlane.f32.xlu0 %v508
    %v566 = vpop.xlane.xlu0 %565
    %567 = vadd.xlane.f32.xlu0 %v509
    %v568 = vpop.xlane.xlu0 %567
    %569 = vadd.xlane.f32.xlu0 %v510
    %v570 = vpop.xlane.xlu0 %569
    %571 = vadd.xlane.f32.xlu0 %v511
    %v572 = vpop.xlane.xlu0 %571
    %573 = vadd.xlane.f32.xlu0 %v512
    %v574 = vpop.xlane.xlu0 %573
    %575 = vadd.xlane.f32.xlu0 %v513
    %v576 = vpop.xlane.xlu0 %575
    %577 = vadd.xlane.f32.xlu0 %v514
    %v578 = vpop.xlane.xlu0 %577
    %579 = vadd.xlane.f32.xlu0 %v515
    %v580 = vpop.xlane.xlu0 %579
    %581 = vadd.xlane.f32.xlu0 %v516
    %v582 = vpop.xlane.xlu0 %581
    %583 = vadd.xlane.f32.xlu0 %v517
    %v584 = vpop.xlane.xlu0 %583
    %585 = vadd.xlane.f32.xlu0 %v518
    %v586 = vpop.xlane.xlu0 %585
    %587 = vadd.xlane.f32.xlu0 %v519
    %v588 = vpop.xlane.xlu0 %587
    %589 = vadd.xlane.f32.xlu0 %v520
    %v590 = vpop.xlane.xlu0 %589
    %591 = vadd.xlane.f32.xlu0 %v521
    %v592 = vpop.xlane.xlu0 %591
    %593 = vadd.xlane.f32.xlu0 %v522
    %v594 = vpop.xlane.xlu0 %593
    %595 = vadd.xlane.f32.xlu0 %v523
    %v596 = vpop.xlane.xlu0 %595
    %597 = vadd.xlane.f32.xlu0 %v524
    %v598 = vpop.xlane.xlu0 %597
    %599 = vadd.xlane.f32.xlu0 %v525
    %v600 = vpop.xlane.xlu0 %599
    %601 = vadd.xlane.f32.xlu0 %v526
    %v602 = vpop.xlane.xlu0 %601
    %603 = vadd.xlane.f32.xlu0 %v527
    %v604 = vpop.xlane.xlu0 %603
    %605 = vadd.xlane.f32.xlu0 %v528
    %v606 = vpop.xlane.xlu0 %605
    %607 = vadd.xlane.f32.xlu0 %v529
    %v608 = vpop.xlane.xlu0 %607
    %609 = vadd.xlane.f32.xlu0 %v530
    %v610 = vpop.xlane.xlu0 %609
    %611 = vadd.xlane.f32.xlu0 %v531
    %v612 = vpop.xlane.xlu0 %611
    %613 = vadd.xlane.f32.xlu0 %v532
    %v614 = vpop.xlane.xlu0 %613
    %615 = vadd.xlane.f32.xlu0 %v533
    %v616 = vpop.xlane.xlu0 %615
    %617 = vadd.xlane.f32.xlu0 %v534
    %v618 = vpop.xlane.xlu0 %617
    %619 = vadd.xlane.f32.xlu0 %v535
    %v620 = vpop.xlane.xlu0 %619
    %621 = vadd.xlane.f32.xlu0 %v536
    %v622 = vpop.xlane.xlu0 %621
    %623 = vadd.xlane.f32.xlu0 %v537
    %v624 = vpop.xlane.xlu0 %623
    %625 = vadd.xlane.f32.xlu0 %v538
    %v626 = vpop.xlane.xlu0 %625
    %627 = vadd.xlane.f32.xlu0 %v539
    %v628 = vpop.xlane.xlu0 %627
    %629 = vadd.xlane.f32.xlu0 %v540
    %v630 = vpop.xlane.xlu0 %629
    %631 = vadd.xlane.f32.xlu0 %v541
    %v632 = vpop.xlane.xlu0 %631
    %633 = vadd.xlane.f32.xlu0 %v542
    %v634 = vpop.xlane.xlu0 %633
    %635 = vadd.xlane.f32.xlu0 %v543
    %v636 = vpop.xlane.xlu0 %635
    %637 = vadd.xlane.f32.xlu0 %v544
    %v638 = vpop.xlane.xlu0 %637
    %639 = vadd.xlane.f32.xlu0 %v545
    %v640 = vpop.xlane.xlu0 %639
    %641 = vadd.xlane.f32.xlu0 %v546
    %v642 = vpop.xlane.xlu0 %641
    %v643 = vmax.f32 %v548, 1e-12
    %v644 = vmax.f32 %v550, 1e-12
    %v645 = vmax.f32 %v552, 1e-12
    %v646 = vmax.f32 %v554, 1e-12
    %v647 = vmax.f32 %v556, 1e-12
    %v648 = vmax.f32 %v558, 1e-12
    %v649 = vmax.f32 %v560, 1e-12
    %v650 = vmax.f32 %v562, 1e-12
    %v651 = vmax.f32 %v564, 1e-12
    %v652 = vmax.f32 %v566, 1e-12
    %v653 = vmax.f32 %v568, 1e-12
    %v654 = vmax.f32 %v570, 1e-12
    %v655 = vmax.f32 %v572, 1e-12
    %v656 = vmax.f32 %v574, 1e-12
    %v657 = vmax.f32 %v576, 1e-12
    %v658 = vmax.f32 %v578, 1e-12
    %v659 = vmax.f32 %v580, 1e-12
    %v660 = vmax.f32 %v582, 1e-12
    %v661 = vmax.f32 %v584, 1e-12
    %v662 = vmax.f32 %v586, 1e-12
    %v663 = vmax.f32 %v588, 1e-12
    %v664 = vmax.f32 %v590, 1e-12
    %v665 = vmax.f32 %v592, 1e-12
    %v666 = vmax.f32 %v594, 1e-12
    %v667 = vmax.f32 %v596, 1e-12
    %v668 = vmax.f32 %v598, 1e-12
    %v669 = vmax.f32 %v600, 1e-12
    %v670 = vmax.f32 %v602, 1e-12
    %v671 = vmax.f32 %v604, 1e-12
    %v672 = vmax.f32 %v606, 1e-12
    %v673 = vmax.f32 %v608, 1e-12
    %v674 = vmax.f32 %v610, 1e-12
    %v675 = vmax.f32 %v612, 1e-12
    %v676 = vmax.f32 %v614, 1e-12
    %v677 = vmax.f32 %v616, 1e-12
    %v678 = vmax.f32 %v618, 1e-12
    %v679 = vmax.f32 %v620, 1e-12
    %v680 = vmax.f32 %v622, 1e-12
    %v681 = vmax.f32 %v624, 1e-12
    %v682 = vmax.f32 %v626, 1e-12
    %v683 = vmax.f32 %v628, 1e-12
    %v684 = vmax.f32 %v630, 1e-12
    %v685 = vmax.f32 %v632, 1e-12
    %v686 = vmax.f32 %v634, 1e-12
    %v687 = vmax.f32 %v636, 1e-12
    %v688 = vmax.f32 %v638, 1e-12
    %v689 = vmax.f32 %v640, 1e-12
    %v690 = vmax.f32 %v642, 1e-12
    %v691 = vrsqrt.pop %v643
    %v692 = vrsqrt.pop %v644
    %v693 = vrsqrt.pop %v645
    %v694 = vrsqrt.pop %v646
    %v695 = vrsqrt.pop %v647
    %v696 = vrsqrt.pop %v648
    %v697 = vrsqrt.pop %v649
    %v698 = vrsqrt.pop %v650
    %v699 = vrsqrt.pop %v651
    %v700 = vrsqrt.pop %v652
    %v701 = vrsqrt.pop %v653
    %v702 = vrsqrt.pop %v654
    %v703 = vrsqrt.pop %v655
    %v704 = vrsqrt.pop %v656
    %v705 = vrsqrt.pop %v657
    %v706 = vrsqrt.pop %v658
    %v707 = vrsqrt.pop %v659
    %v708 = vrsqrt.pop %v660
    %v709 = vrsqrt.pop %v661
    %v710 = vrsqrt.pop %v662
    %v711 = vrsqrt.pop %v663
    %v712 = vrsqrt.pop %v664
    %v713 = vrsqrt.pop %v665
    %v714 = vrsqrt.pop %v666
    %v715 = vrsqrt.pop %v667
    %v716 = vrsqrt.pop %v668
    %v717 = vrsqrt.pop %v669
    %v718 = vrsqrt.pop %v670
    %v719 = vrsqrt.pop %v671
    %v720 = vrsqrt.pop %v672
    %v721 = vrsqrt.pop %v673
    %v722 = vrsqrt.pop %v674
    %v723 = vrsqrt.pop %v675
    %v724 = vrsqrt.pop %v676
    %v725 = vrsqrt.pop %v677
    %v726 = vrsqrt.pop %v678
    %v727 = vrsqrt.pop %v679
    %v728 = vrsqrt.pop %v680
    %v729 = vrsqrt.pop %v681
    %v730 = vrsqrt.pop %v682
    %v731 = vrsqrt.pop %v683
    %v732 = vrsqrt.pop %v684
    %v733 = vrsqrt.pop %v685
    %v734 = vrsqrt.pop %v686
    %v735 = vrsqrt.pop %v687
    %v736 = vrsqrt.pop %v688
    %v737 = vrsqrt.pop %v689
    %v738 = vrsqrt.pop %v690
    %v739 = vmul.f32 %v309, %v691
    %v740 = vmul.f32 %v312, %v692
    %v741 = vmul.f32 %v317, %v693
    %v742 = vmul.f32 %v320, %v694
    %v743 = vmul.f32 %v325, %v695
    %v744 = vmul.f32 %v328, %v696
    %v745 = vmul.f32 %v333, %v697
    %v746 = vmul.f32 %v336, %v698
    %v747 = vmul.f32 %v341, %v699
    %v748 = vmul.f32 %v344, %v700
    %v749 = vmul.f32 %v349, %v701
    %v750 = vmul.f32 %v352, %v702
    %v751 = vmul.f32 %v357, %v703
    %v752 = vmul.f32 %v360, %v704
    %v753 = vmul.f32 %v365, %v705
    %v754 = vmul.f32 %v368, %v706
    %v755 = vmul.f32 %v373, %v707
    %v756 = vmul.f32 %v376, %v708
    %v757 = vmul.f32 %v381, %v709
    %v758 = vmul.f32 %v384, %v710
    %v759 = vmul.f32 %v389, %v711
    %v760 = vmul.f32 %v392, %v712
    %v761 = vmul.f32 %v397, %v713
    %v762 = vmul.f32 %v400, %v714
    %v763 = vmul.f32 %v405, %v715
    %v764 = vmul.f32 %v408, %v716
    %v765 = vmul.f32 %v413, %v717
    %v766 = vmul.f32 %v416, %v718
    %v767 = vmul.f32 %v421, %v719
    %v768 = vmul.f32 %v424, %v720
    %v769 = vmul.f32 %v429, %v721
    %v770 = vmul.f32 %v432, %v722
    %v771 = vmul.f32 %v437, %v723
    %v772 = vmul.f32 %v440, %v724
    %v773 = vmul.f32 %v445, %v725
    %v774 = vmul.f32 %v448, %v726
    %v775 = vmul.f32 %v453, %v727
    %v776 = vmul.f32 %v456, %v728
    %v777 = vmul.f32 %v461, %v729
    %v778 = vmul.f32 %v464, %v730
    %v779 = vmul.f32 %v469, %v731
    %v780 = vmul.f32 %v472, %v732
    %v781 = vmul.f32 %v477, %v733
    %v782 = vmul.f32 %v480, %v734
    %v783 = vmul.f32 %v485, %v735
    %v784 = vmul.f32 %v488, %v736
    %v785 = vmul.f32 %v493, %v737
    %v786 = vmul.f32 %v496, %v738
    %v787 = vadd.f32 %v739, %v755
    %v788 = vadd.f32 %v787, %v771
    %v789 = vadd.f32 %v740, %v756
    %v790 = vadd.f32 %v789, %v772
    %v791 = vadd.f32 %v741, %v757
    %v792 = vadd.f32 %v791, %v773
    %v793 = vadd.f32 %v742, %v758
    %v794 = vadd.f32 %v793, %v774
    %v795 = vadd.f32 %v743, %v759
    %v796 = vadd.f32 %v795, %v775
    %v797 = vadd.f32 %v744, %v760
    %v798 = vadd.f32 %v797, %v776
    %v799 = vadd.f32 %v745, %v761
    %v800 = vadd.f32 %v799, %v777
    %v801 = vadd.f32 %v746, %v762
    %v802 = vadd.f32 %v801, %v778
    %v803 = vadd.f32 %v747, %v763
    %v804 = vadd.f32 %v803, %v779
    %v805 = vadd.f32 %v748, %v764
    %v806 = vadd.f32 %v805, %v780
    %v807 = vadd.f32 %v749, %v765
    %v808 = vadd.f32 %v807, %v781
    %v809 = vadd.f32 %v750, %v766
    %v810 = vadd.f32 %v809, %v782
    %v811 = vadd.f32 %v751, %v767
    %v812 = vadd.f32 %v811, %v783
    %v813 = vadd.f32 %v752, %v768
    %v814 = vadd.f32 %v813, %v784
    %v815 = vadd.f32 %v753, %v769
    %v816 = vadd.f32 %v815, %v785
    %v817 = vadd.f32 %v754, %v770
    %v818 = vadd.f32 %v817, %v786
    %v819 = vmul.f32 %v788, %v788
    %v820 = vmul.f32 %v790, %v790
    %v821 = vmul.f32 %v792, %v792
    %v822 = vmul.f32 %v794, %v794
    %v823 = vmul.f32 %v796, %v796
    %v824 = vmul.f32 %v798, %v798
    %v825 = vmul.f32 %v800, %v800
    %v826 = vmul.f32 %v802, %v802
    %v827 = vmul.f32 %v804, %v804
    %v828 = vmul.f32 %v806, %v806
    %v829 = vmul.f32 %v808, %v808
    %v830 = vmul.f32 %v810, %v810
    %v831 = vmul.f32 %v812, %v812
    %v832 = vmul.f32 %v814, %v814
    %v833 = vmul.f32 %v816, %v816
    %v834 = vmul.f32 %v818, %v818
    %835 = vadd.xlane.f32.xlu0 %v819
    %v836 = vpop.xlane.xlu0 %835
    %837 = vadd.xlane.f32.xlu0 %v820
    %v838 = vpop.xlane.xlu0 %837
    %839 = vadd.xlane.f32.xlu0 %v821
    %v840 = vpop.xlane.xlu0 %839
    %841 = vadd.xlane.f32.xlu0 %v822
    %v842 = vpop.xlane.xlu0 %841
    %843 = vadd.xlane.f32.xlu0 %v823
    %v844 = vpop.xlane.xlu0 %843
    %845 = vadd.xlane.f32.xlu0 %v824
    %v846 = vpop.xlane.xlu0 %845
    %847 = vadd.xlane.f32.xlu0 %v825
    %v848 = vpop.xlane.xlu0 %847
    %849 = vadd.xlane.f32.xlu0 %v826
    %v850 = vpop.xlane.xlu0 %849
    %851 = vadd.xlane.f32.xlu0 %v827
    %v852 = vpop.xlane.xlu0 %851
    %853 = vadd.xlane.f32.xlu0 %v828
    %v854 = vpop.xlane.xlu0 %853
    %855 = vadd.xlane.f32.xlu0 %v829
    %v856 = vpop.xlane.xlu0 %855
    %857 = vadd.xlane.f32.xlu0 %v830
    %v858 = vpop.xlane.xlu0 %857
    %859 = vadd.xlane.f32.xlu0 %v831
    %v860 = vpop.xlane.xlu0 %859
    %861 = vadd.xlane.f32.xlu0 %v832
    %v862 = vpop.xlane.xlu0 %861
    %863 = vadd.xlane.f32.xlu0 %v833
    %v864 = vpop.xlane.xlu0 %863
    %865 = vadd.xlane.f32.xlu0 %v834
    %v866 = vpop.xlane.xlu0 %865
    %v867 = vmax.f32 %v836, 1e-12
    %v868 = vmax.f32 %v838, 1e-12
    %v869 = vmax.f32 %v840, 1e-12
    %v870 = vmax.f32 %v842, 1e-12
    %v871 = vmax.f32 %v844, 1e-12
    %v872 = vmax.f32 %v846, 1e-12
    %v873 = vmax.f32 %v848, 1e-12
    %v874 = vmax.f32 %v850, 1e-12
    %v875 = vmax.f32 %v852, 1e-12
    %v876 = vmax.f32 %v854, 1e-12
    %v877 = vmax.f32 %v856, 1e-12
    %v878 = vmax.f32 %v858, 1e-12
    %v879 = vmax.f32 %v860, 1e-12
    %v880 = vmax.f32 %v862, 1e-12
    %v881 = vmax.f32 %v864, 1e-12
    %v882 = vmax.f32 %v866, 1e-12
    %v883 = vrsqrt.pop %v867
    %v884 = vrsqrt.pop %v868
    %v885 = vrsqrt.pop %v869
    %v886 = vrsqrt.pop %v870
    %v887 = vrsqrt.pop %v871
    %v888 = vrsqrt.pop %v872
    %v889 = vrsqrt.pop %v873
    %v890 = vrsqrt.pop %v874
    %v891 = vrsqrt.pop %v875
    %v892 = vrsqrt.pop %v876
    %v893 = vrsqrt.pop %v877
    %v894 = vrsqrt.pop %v878
    %v895 = vrsqrt.pop %v879
    %v896 = vrsqrt.pop %v880
    %v897 = vrsqrt.pop %v881
    %v898 = vrsqrt.pop %v882
    %v899 = vmul.f32 %v788, %v883
    %v900 = vmul.f32 %v790, %v884
    %v901 = vmul.f32 %v792, %v885
    %v902 = vmul.f32 %v794, %v886
    %v903 = vmul.f32 %v796, %v887
    %v904 = vmul.f32 %v798, %v888
    %v905 = vmul.f32 %v800, %v889
    %v906 = vmul.f32 %v802, %v890
    %v907 = vmul.f32 %v804, %v891
    %v908 = vmul.f32 %v806, %v892
    %v909 = vmul.f32 %v808, %v893
    %v910 = vmul.f32 %v810, %v894
    %v911 = vmul.f32 %v812, %v895
    %v912 = vmul.f32 %v814, %v896
    %v913 = vmul.f32 %v816, %v897
    %v914 = vmul.f32 %v818, %v898
    %s915 = sld [smem:[#allocation2]]
    %v916 = vstv %s915
    %v917 = vmul.f32 %v916, %v899
    %v918 = vmul.f32 %v916, %v900
    %v919 = vmul.f32 %v916, %v901
    %v920 = vmul.f32 %v916, %v902
    %v921 = vmul.f32 %v916, %v903
    %v922 = vmul.f32 %v916, %v904
    %v923 = vmul.f32 %v916, %v905
    %v924 = vmul.f32 %v916, %v906
    %v925 = vmul.f32 %v916, %v907
    %v926 = vmul.f32 %v916, %v908
    %v927 = vmul.f32 %v916, %v909
    %v928 = vmul.f32 %v916, %v910
    %v929 = vmul.f32 %v916, %v911
    %v930 = vmul.f32 %v916, %v912
    %v931 = vmul.f32 %v916, %v913
    %v932 = vmul.f32 %v916, %v914
    %v933 = vpack.c.bf16 %v918, %v917
    %v934 = vpack.c.bf16 %v920, %v919
    %v935 = vpack.c.bf16 %v922, %v921
    %v936 = vpack.c.bf16 %v924, %v923
    %v937 = vpack.c.bf16 %v926, %v925
    %v938 = vpack.c.bf16 %v928, %v927
    %v939 = vpack.c.bf16 %v930, %v929
    %v940 = vpack.c.bf16 %v932, %v931
    %v949 = vunpack.c.l.b16 %v933
    %v950 = vunpack.c.h.b16 %v933
    %v951 = vunpack.c.l.b16 %v934
    %v952 = vunpack.c.h.b16 %v934
    %v953 = vunpack.c.l.b16 %v935
    %v954 = vunpack.c.h.b16 %v935
    %v955 = vunpack.c.l.b16 %v936
    %v956 = vunpack.c.h.b16 %v936
    %v957 = vunpack.c.l.b16 %v937
    %v958 = vunpack.c.h.b16 %v937
    %v959 = vunpack.c.l.b16 %v938
    %v960 = vunpack.c.h.b16 %v938
    %v961 = vunpack.c.l.b16 %v939
    %v962 = vunpack.c.h.b16 %v939
    %v963 = vunpack.c.l.b16 %v940
    %v964 = vunpack.c.h.b16 %v940
    %v965 = vpack.c.b16 %v949, %v949
    %v966 = vpack.c.b16 %v950, %v950
    %v967 = vpack.c.b16 %v951, %v951
    %v968 = vpack.c.b16 %v952, %v952
    %v969 = vpack.c.b16 %v953, %v953
    %v970 = vpack.c.b16 %v954, %v954
    %v971 = vpack.c.b16 %v955, %v955
    %v972 = vpack.c.b16 %v956, %v956
    %v973 = vpack.c.b16 %v957, %v957
    %v974 = vpack.c.b16 %v958, %v958
    %v975 = vpack.c.b16 %v959, %v959
    %v976 = vpack.c.b16 %v960, %v960
    %v977 = vpack.c.b16 %v961, %v961
    %v978 = vpack.c.b16 %v962, %v962
    %v979 = vpack.c.b16 %v963, %v963
    %v980 = vpack.c.b16 %v964, %v964
    %997 = vst [vmem:[#allocation3] sm:$0xf] %v965
    %998 = vst [vmem:[#allocation3 + $0x4] sm:$0xf] %v966
    %999 = vst [vmem:[#allocation3 + $0x8] sm:$0xf] %v967
    %1000 = vst [vmem:[#allocation3 + $0xc] sm:$0xf] %v968
    %1001 = vst [vmem:[#allocation3 + $0x10] sm:$0xf] %v969
    %1002 = vst [vmem:[#allocation3 + $0x14] sm:$0xf] %v970
    %1003 = vst [vmem:[#allocation3 + $0x18] sm:$0xf] %v971
    %1004 = vst [vmem:[#allocation3 + $0x1c] sm:$0xf] %v972
    %1005 = vst [vmem:[#allocation3 + $0x20] sm:$0xf] %v973
    %1006 = vst [vmem:[#allocation3 + $0x24] sm:$0xf] %v974
    %1007 = vst [vmem:[#allocation3 + $0x28] sm:$0xf] %v975
    %1008 = vst [vmem:[#allocation3 + $0x2c] sm:$0xf] %v976
    %1009 = vst [vmem:[#allocation3 + $0x30] sm:$0xf] %v977
    %1010 = vst [vmem:[#allocation3 + $0x34] sm:$0xf] %v978
    %1011 = vst [vmem:[#allocation3 + $0x38] sm:$0xf] %v979
    %1012 = vst [vmem:[#allocation3 + $0x3c] sm:$0xf] %v980
    // Predicated region
    $region14: #{tpu_custom_call.1} parent=1 // pred_check
      _
    $region15: #{tpu_custom_call.1} parent=1 // pred_check_branch
      %1014 = sbr.rel (0) target = $region17
    $region16: #{tpu_custom_call.1} parent=1 // pred_region
      %s1016 = ssub.s32 1024, 1024
      %1017 = vsyncadd [#allocation4], %s1016
      %s1018 = sshll.u32 [#allocation3], 4
      %s1019 = int_to_ptr.vmem [resolvable:$true] %s1018
      %1024 = dma.vmem_to_hbm [thread:$0]  %s1019, 1024, %s3, [#allocation4], 64, 64, 4
    $region17: #{tpu_custom_call.1} parent=1 // pred_fallthru
      _
    // Predicated region
    $region18: #{tpu_custom_call.1} parent=1 // pred_check
      _
    $region19: #{tpu_custom_call.1} parent=1 // pred_check_branch
      %1026 = sbr.rel (0) target = $region21
    $region20: #{tpu_custom_call.1} parent=1 // pred_region
      %1027 = dma.done [#allocation4], 1024
    $region21: #{tpu_custom_call.1} parent=1 // pred_fallthru
      _
    %1028 = vsyncpa [#allocation4], 1

</llo_original>
